<compile_context>
chip_gen: v6e
topology: v6e:2x2x1
jax: 0.10.0
libtpu: 0.0.40
codegen_flags: <defaults>
</compile_context>

<pallas_src>
import jax
import jax.numpy as jnp
from jax.experimental import pallas as pl
from jax.experimental.pallas import tpu as pltpu


def _policy_kernel(x_ref, w1_ref, b1_ref, w2_ref, b2_ref, o_ref):
    w1 = w1_ref[...]                                    # [H, D_in]
    x = x_ref[...].astype(w1.dtype)                     # [Bt, D_in]; in-kernel cast (no extra HBM pass)

    # h_t[H, Bt] = w1 @ x^T  (NT contraction over the last dim of both; MXU, f32 acc)
    h = jax.lax.dot_general(w1, x, (((1,), (1,)), ((), ())),
                            preferred_element_type=jnp.float32)
    h = jnp.maximum(h + b1_ref[...], 0.0)               # [H,Bt] + [H,1] broadcast, f32

    w2 = w2_ref[...]                                    # [D_out, H]
    logits = jnp.dot(w2, h.astype(w2.dtype),
                     preferred_element_type=jnp.float32)
    logits = logits + b2_ref[...]                       # [D_out,Bt] + [D_out,1] broadcast

    # Numerically stable softmax over the D_out sublanes, lane-dense in batch.
    m = jnp.max(logits, axis=0, keepdims=True)
    e = jnp.exp(logits - m)
    denom = jnp.sum(e, axis=0, keepdims=True)
    o_ref[...] = (e / denom).astype(o_ref.dtype)        # exact normalization (VALU slack is huge)


_V5E_DEFAULT_SCOPED_VMEM = 16 * 1024 * 1024  # smallest default scoped VMEM across generations


def policy_network_forward(state, w1, b1, w2, b2, *, batch_tile=None,
                           compute_dtype=None, vmem_limit_bytes=None,
                           feature_major_output=False):
    """Forward pass of PolicyNetwork.

    state: [B, D_in]; w1: [H, D_in]; b1: [H]; w2: [D_out, H]; b2: [D_out]
    (PyTorch nn.Linear-native [out_features, in_features] weight layout).

    batch_tile: None -> auto (single-shot while it fits VMEM, else >=4096-row tiles);
                int  -> forced tile (must divide B, multiple of 128 when tiling).
    compute_dtype: e.g. jnp.bfloat16 -> MXU operands in bf16 (recommended on
                v6e/v7x when state is bf16 end-to-end); accumulation and all
                elementwise/softmax work stay f32.
    feature_major_output: return the lane-dense [D_out, B] kernel output
                directly (skip the [B, D_out] transpose) for lane-dense consumers.
    """
    B, D_in = state.shape
    H, d_in_w = w1.shape
    assert d_in_w == D_in
    D_out, h_w = w2.shape
    assert h_w == H

    # Biases as [*, 1] columns (broadcast over the lane/batch axis), kept f32.
    b1_col = b1.reshape(H, 1).astype(jnp.float32)
    b2_col = b2.reshape(D_out, 1).astype(jnp.float32)

    if compute_dtype is not None:
        # Weights are ~12 KB and VMEM-resident: a one-time wrapper cast is
        # negligible.  The dominant activation stream is cast inside the
        # kernel, so no extra HBM pass is added.
        w1 = w1.astype(compute_dtype)
        w2 = w2.astype(compute_dtype)

    out_shape = jax.ShapeDtypeStruct((D_out, B), state.dtype)

    # ---- single-shot vs. tiled crossover ---------------------------------
    budget = vmem_limit_bytes if vmem_limit_bytes is not None else _V5E_DEFAULT_SCOPED_VMEM
    itemsize = state.dtype.itemsize
    weight_bytes = (w1.size * w1.dtype.itemsize + w2.size * w2.dtype.itemsize
                    + b1_col.size * 4 + b2_col.size * 4)
    per_row_bytes = (D_in + D_out) * itemsize            # kernel in + out per batch row
    fits_single_shot = weight_bytes + B * per_row_bytes <= budget // 2  # headroom

    cp_kwargs = {}
    if vmem_limit_bytes is not None:
        cp_kwargs["vmem_limit_bytes"] = vmem_limit_bytes

    use_single_shot = False
    if batch_tile is not None and batch_tile >= B:
        use_single_shot = True
    elif batch_tile is None:
        if fits_single_shot or B % 128 != 0:
            # TODO(synk): ragged B that doesn't fit VMEM would need padding or
            # pl.BoundedSlice; not needed for this module's use cases.
            use_single_shot = True
        else:
            # Big tiles amortize the ~0.35 us per-grid-step pipeline overhead;
            # 4096 f32 rows are ~0.5 MB of state (1 MB double-buffered) and fit
            # the default scoped VMEM on every generation, including v7x.
            batch_tile = 4096
            while batch_tile > 128 and B % batch_tile != 0:
                batch_tile //= 2

    if use_single_shot:
        # -- single-shot: whole problem in VMEM, no grid, no pipeline machinery --
        out_t = pl.pallas_call(
            _policy_kernel,
            out_shape=out_shape,
            in_specs=[pl.BlockSpec(memory_space=pltpu.MemorySpace.VMEM)] * 5,
            out_specs=pl.BlockSpec(memory_space=pltpu.MemorySpace.VMEM),
            compiler_params=pltpu.CompilerParams(**cp_kwargs) if cp_kwargs else None,
        )(state, w1, b1_col, w2, b2_col)
    else:
        assert B % batch_tile == 0, "tiled path requires B divisible by batch_tile"
        assert batch_tile % 128 == 0, "batch tile is the lane dim -> multiple of 128"

        out_t = pl.pallas_call(
            _policy_kernel,
            out_shape=out_shape,
            grid_spec=pltpu.PrefetchScalarGridSpec(
                num_scalar_prefetch=0,
                grid=(B // batch_tile,),
                in_specs=[
                    pl.BlockSpec((batch_tile, D_in), lambda i: (i, 0)),   # streamed activations
                    pl.BlockSpec((H, D_in), lambda i: (0, 0)),            # resident weights
                    pl.BlockSpec((H, 1), lambda i: (0, 0)),
                    pl.BlockSpec((D_out, H), lambda i: (0, 0)),
                    pl.BlockSpec((D_out, 1), lambda i: (0, 0)),
                ],
                out_specs=pl.BlockSpec((D_out, batch_tile), lambda i: (0, i)),  # lane-dense store
            ),
            compiler_params=pltpu.CompilerParams(
                dimension_semantics=("parallel",),   # v7x: both TCs split the batch stream
                **cp_kwargs,
            ),
        )(state, w1, b1_col, w2, b2_col)

    if feature_major_output:
        return out_t            # [D_out, B], lane-dense producer for lane-dense consumers
    # Module semantics: [B, D_out].  The transpose back is layout plumbing;
    # lane-dense consumers should pass feature_major_output=True and skip it.
    return out_t.T


def _reference(state, w1, b1, w2, b2):
    h = jnp.maximum(state @ w1.T + b1, 0.0)
    logits = h @ w2.T + b2
    return jax.nn.softmax(logits, axis=-1)


if __name__ == "__main__":
    key = jax.random.PRNGKey(0)
    k_x, k_w1, k_b1, k_w2, k_b2, k_xb = jax.random.split(key, 6)

    # Tiny MLP consistent with the module's forward (sizes are constructor args).
    input_size, hidden_size, output_size = 32, 64, 16
    # PyTorch nn.Linear-native layouts: weight is [out_features, in_features].
    w1 = jax.random.normal(k_w1, (hidden_size, input_size), dtype=jnp.float32) * 0.1
    b1 = jax.random.normal(k_b1, (hidden_size,), dtype=jnp.float32) * 0.1
    w2 = jax.random.normal(k_w2, (output_size, hidden_size), dtype=jnp.float32) * 0.1
    b2 = jax.random.normal(k_b2, (output_size,), dtype=jnp.float32) * 0.1

    # --- Small batch: single-shot, grid-free path (exact f32 softmax). ---
    batch = 8
    state = jax.random.normal(k_x, (batch, input_size), dtype=jnp.float32)
    out = jax.block_until_ready(policy_network_forward(state, w1, b1, w2, b2))
    ref = _reference(state, w1, b1, w2, b2)
    assert out.shape == (batch, output_size)
    assert jnp.allclose(out, ref, atol=1e-5, rtol=1e-5)
    assert jnp.allclose(jnp.sum(out, axis=-1), 1.0, atol=1e-5)

    # --- Large batch: explicitly exercise the tiled path with 4096-row tiles
    #     (auto policy would still pick single-shot here since 8192 rows fit VMEM).
    big_batch = 8192
    state_b = jax.random.normal(k_xb, (big_batch, input_size), dtype=jnp.float32)
    out_b = jax.block_until_ready(
        policy_network_forward(state_b, w1, b1, w2, b2, batch_tile=4096))
    ref_b = _reference(state_b, w1, b1, w2, b2)
    assert out_b.shape == (big_batch, output_size)
    assert jnp.allclose(out_b, ref_b, atol=1e-5, rtol=1e-5)
    assert jnp.allclose(jnp.sum(out_b, axis=-1), 1.0, atol=1e-5)

    # --- bf16 MXU operands (recommended default on v6e/v7x); elementwise stays f32.
    #     Loose tolerance is intentional: bf16 perturbs logits at ~1e-2 relative.
    out_bf16 = jax.block_until_ready(
        policy_network_forward(state, w1, b1, w2, b2, compute_dtype=jnp.bfloat16))
    assert out_bf16.shape == (batch, output_size)
    assert jnp.allclose(out_bf16, ref, atol=3e-2)
    assert jnp.allclose(jnp.sum(out_bf16, axis=-1), 1.0, atol=1e-3)

    print("KERNEL_OK")
</pallas_src>

<mosaic_0001>
module attributes {stable_mosaic.version = 11 : i64} {
  func.func @_policy_kernel(%arg0: memref<8x32xf32, #tpu.memory_space<vmem>>, %arg1: memref<64x32xf32, #tpu.memory_space<vmem>>, %arg2: memref<64x1xf32, #tpu.memory_space<vmem>>, %arg3: memref<16x64xf32, #tpu.memory_space<vmem>>, %arg4: memref<16x1xf32, #tpu.memory_space<vmem>>, %arg5: memref<16x8xf32, #tpu.memory_space<vmem>>) attributes {dimension_semantics = [], scalar_prefetch = 0 : i64, scratch_operands = 0 : i64, tpu.core_type = #tpu.core_type<tc>} {
    %c0 = arith.constant 0 : index
    %c0_0 = arith.constant 0 : index
    %0 = vector.load %arg1[%c0, %c0_0] : memref<64x32xf32, #tpu.memory_space<vmem>>, vector<64x32xf32>
    %c0_1 = arith.constant 0 : index
    %c0_2 = arith.constant 0 : index
    %1 = vector.load %arg0[%c0_1, %c0_2] : memref<8x32xf32, #tpu.memory_space<vmem>>, vector<8x32xf32>
    %cst = arith.constant dense<0.000000e+00> : vector<64x8xf32>
    %2 = tpu.matmul %0, %1, %cst {dimension_numbers = #tpu.dot_dimension_numbers<[1], [1], [0], [0], [0, 0, 1, 0], [], []>} : vector<64x32xf32>, vector<8x32xf32>, vector<64x8xf32> -> vector<64x8xf32>
    %c0_3 = arith.constant 0 : index
    %c0_4 = arith.constant 0 : index
    %3 = vector.load %arg2[%c0_3, %c0_4] : memref<64x1xf32, #tpu.memory_space<vmem>>, vector<64x1xf32>
    %4 = vector.broadcast %3 : vector<64x1xf32> to vector<64x8xf32>
    %5 = arith.addf %2, %4 : vector<64x8xf32>
    %cst_5 = arith.constant 0.000000e+00 : f32
    %6 = vector.broadcast %cst_5 : f32 to vector<64x8xf32>
    %7 = arith.maximumf %5, %6 : vector<64x8xf32>
    %c0_6 = arith.constant 0 : index
    %c0_7 = arith.constant 0 : index
    %8 = vector.load %arg3[%c0_6, %c0_7] : memref<16x64xf32, #tpu.memory_space<vmem>>, vector<16x64xf32>
    %cst_8 = arith.constant dense<0.000000e+00> : vector<16x8xf32>
    %9 = tpu.matmul %8, %7, %cst_8 {dimension_numbers = #tpu.dot_dimension_numbers<[1], [0], [0], [1], [0, 0, 1, 1], [], []>} : vector<16x64xf32>, vector<64x8xf32>, vector<16x8xf32> -> vector<16x8xf32>
    %c0_9 = arith.constant 0 : index
    %c0_10 = arith.constant 0 : index
    %10 = vector.load %arg4[%c0_9, %c0_10] : memref<16x1xf32, #tpu.memory_space<vmem>>, vector<16x1xf32>
    %11 = vector.broadcast %10 : vector<16x1xf32> to vector<16x8xf32>
    %12 = arith.addf %9, %11 : vector<16x8xf32>
    %cst_11 = arith.constant dense<0xFF800000> : vector<8xf32>
    %13 = vector.multi_reduction <maximumf>, %12, %cst_11 [0] : vector<16x8xf32> to vector<8xf32>
    %14 = vector.shape_cast %13 : vector<8xf32> to vector<1x8xf32>
    %15 = vector.broadcast %14 : vector<1x8xf32> to vector<16x8xf32>
    %16 = arith.subf %12, %15 : vector<16x8xf32>
    %17 = math.exp %16 : vector<16x8xf32>
    %cst_12 = arith.constant dense<0.000000e+00> : vector<8xf32>
    %18 = vector.multi_reduction <add>, %17, %cst_12 [0] : vector<16x8xf32> to vector<8xf32>
    %19 = vector.shape_cast %18 : vector<8xf32> to vector<1x8xf32>
    %20 = vector.broadcast %19 : vector<1x8xf32> to vector<16x8xf32>
    %21 = arith.divf %17, %20 : vector<16x8xf32>
    %c0_13 = arith.constant 0 : index
    %c0_14 = arith.constant 0 : index
    %22 = vector.load %arg5[%c0_13, %c0_14] : memref<16x8xf32, #tpu.memory_space<vmem>>, vector<16x8xf32>
    tpu.vector_store %arg5[%c0_13, %c0_14], %21 {strides = array<i32>} : memref<16x8xf32, #tpu.memory_space<vmem>>, vector<16x8xf32>,
    return
  }
}

</mosaic_0001>

<llo_original>
// kernel: tpu_custom_call.1
$region0: #{tpu_custom_call.1}
  #allocation0 [shape = 'u32[]', space=smem, size = 0x4, offset = 0x4, fixed_abs, tag = 'smem constant byte address 0x4 - core index']
  #allocation1 [shape = 'u32[144,128]{1,0:T(1,128)}', space=vmem, size = 0x12000, scoped, tag = 'internal scratch']
  %s0 = inlined_call_operand.vmem [shape: f32[8,32], index: 0, kind: input, shape index: {}]
  %s1 = inlined_call_operand.vmem [shape: f32[64,32], index: 1, kind: input, shape index: {}]
  %s2 = inlined_call_operand.vmem [shape: f32[64,1], index: 2, kind: input, shape index: {}]
  %s3 = inlined_call_operand.vmem [shape: f32[16,64], index: 3, kind: input, shape index: {}]
  %s4 = inlined_call_operand.vmem [shape: f32[16,1], index: 4, kind: input, shape index: {}]
  %s5 = inlined_call_operand.vmem [shape: f32[16,8], index: 5, kind: output, shape index: {}]
  %s6 = sld [smem:[#allocation0]]
  $region30: #{tpu_custom_call.1} parent=0
    _
  %s8 = ssub.s32 1, %s6
  %s9 = scalar_select 0, %s8, %s6
  // Predicated region
  $region2: #{tpu_custom_call.1} parent=0 // pred_check
    _
  $region3: #{tpu_custom_call.1} parent=0 // pred_check_branch
    %11 = sbr.rel (0) target = $region5
  $region4: #{tpu_custom_call.1} parent=0 // pred_region
    _
  $region5: #{tpu_custom_call.1} parent=0 // pred_fallthru
    _
  // Predicated region
  $region6: #{tpu_custom_call.1} parent=0 // pred_check
    _
  $region7: #{tpu_custom_call.1} parent=0 // pred_check_branch
    %13 = sbr.rel (0) target = $region9
  $region8: #{tpu_custom_call.1} parent=0 // pred_region
    _
  $region9: #{tpu_custom_call.1} parent=0 // pred_fallthru
    _
  // Predicated region
  $region10: #{tpu_custom_call.1} parent=0 // pred_check
    _
  $region11: #{tpu_custom_call.1} parent=0 // pred_check_branch
    %15 = sbr.rel (0) target = $region13
  $region12: #{tpu_custom_call.1} parent=0 // pred_region
    _
  $region13: #{tpu_custom_call.1} parent=0 // pred_fallthru
    _
  // Predicated region
  $region14: #{tpu_custom_call.1} parent=0 // pred_check
    _
  $region15: #{tpu_custom_call.1} parent=0 // pred_check_branch
    %17 = sbr.rel (0) target = $region17
  $region16: #{tpu_custom_call.1} parent=0 // pred_region
    _
  $region17: #{tpu_custom_call.1} parent=0 // pred_fallthru
    _
  // Predicated region
  $region18: #{tpu_custom_call.1} parent=0 // pred_check
    _
  $region19: #{tpu_custom_call.1} parent=0 // pred_check_branch
    %19 = sbr.rel (0) target = $region21
  $region20: #{tpu_custom_call.1} parent=0 // pred_region
    _
  $region21: #{tpu_custom_call.1} parent=0 // pred_fallthru
    _
  %v20 = vld [vmem:[%s1] sm:$0xff]
  %v21 = vld [vmem:[%s1 + $0x8] sm:$0xff]
  %v22 = vld [vmem:[%s1 + $0x10] sm:$0xff]
  %v23 = vld [vmem:[%s1 + $0x18] sm:$0xff]
  %v24 = vld [vmem:[%s1 + $0x20] sm:$0xff]
  %v25 = vld [vmem:[%s1 + $0x28] sm:$0xff]
  %v26 = vld [vmem:[%s1 + $0x30] sm:$0xff]
  %v27 = vld [vmem:[%s1 + $0x38] sm:$0xff]
  %v28 = vld [vmem:[%s0] sm:$0xff]
  %v29 = vld [vmem:[%s2] sm:$0xff]
  %v30 = vld [vmem:[%s2 + $0x8] sm:$0xff]
  %v31 = vld [vmem:[%s2 + $0x10] sm:$0xff]
  %v32 = vld [vmem:[%s2 + $0x18] sm:$0xff]
  %v33 = vld [vmem:[%s2 + $0x20] sm:$0xff]
  %v34 = vld [vmem:[%s2 + $0x28] sm:$0xff]
  %v35 = vld [vmem:[%s2 + $0x30] sm:$0xff]
  %v36 = vld [vmem:[%s2 + $0x38] sm:$0xff]
  %38 = vset.pattern.permute.xlu0 0
  %39 = vperm.xlu0 %38, %v29
  %v40 = vpop.permute.xlu0 %39
  %43 = vset.pattern.permute.xlu0 0
  %44 = vperm.xlu0 %43, %v30
  %v45 = vpop.permute.xlu0 %44
  %48 = vset.pattern.permute.xlu0 0
  %49 = vperm.xlu0 %48, %v31
  %v50 = vpop.permute.xlu0 %49
  %53 = vset.pattern.permute.xlu0 0
  %54 = vperm.xlu0 %53, %v32
  %v55 = vpop.permute.xlu0 %54
  %58 = vset.pattern.permute.xlu0 0
  %59 = vperm.xlu0 %58, %v33
  %v60 = vpop.permute.xlu0 %59
  %63 = vset.pattern.permute.xlu0 0
  %64 = vperm.xlu0 %63, %v34
  %v65 = vpop.permute.xlu0 %64
  %68 = vset.pattern.permute.xlu0 0
  %69 = vperm.xlu0 %68, %v35
  %v70 = vpop.permute.xlu0 %69
  %73 = vset.pattern.permute.xlu0 0
  %74 = vperm.xlu0 %73, %v36
  %v75 = vpop.permute.xlu0 %74
  %vm77 = vcmask 261120
  %v79 = vsel %vm77, %v20, 0
  %v82 = vsel %vm77, %v21, 0
  %v85 = vsel %vm77, %v22, 0
  %v88 = vsel %vm77, %v23, 0
  %v91 = vsel %vm77, %v24, 0
  %v94 = vsel %vm77, %v25, 0
  %v97 = vsel %vm77, %v26, 0
  %v100 = vsel %vm77, %v27, 0
  %v103 = vsel %vm77, %v28, 0
  %105 = vmatprep.subr.mxu0 0.0
  %106 = vmatpush1.xpose.msra.mxu0 0.0
  %107 = vmatprep.subr.mxu0 0.0
  %108 = vmatpush1.xpose.msra.mxu0 0.0
  %109 = vmatprep.subr.mxu0 0.0
  %110 = vmatpush1.xpose.msra.mxu0 0.0
  %111 = vmatprep.subr.mxu0 0.0
  %112 = vmatpush1.xpose.msra.mxu0 0.0
  %113 = vmatprep.subr.mxu0 0.0
  %114 = vmatpush1.xpose.msra.mxu0 0.0
  %115 = vmatprep.subr.mxu0 0.0
  %116 = vmatpush1.xpose.msra.mxu0 0.0
  %117 = vmatprep.subr.mxu0 0.0
  %118 = vmatpush1.xpose.msra.mxu0 0.0
  %119 = vmatprep.subr.mxu0 0.0
  %120 = vmatpush1.xpose.msra.mxu0 0.0
  %121 = vmatprep.subr.mxu0 0.0
  %122 = vmatpush1.xpose.msra.mxu0 0.0
  %123 = vmatprep.subr.mxu0 0.0
  %124 = vmatpush1.xpose.msra.mxu0 0.0
  %125 = vmatprep.subr.mxu0 0.0
  %126 = vmatpush1.xpose.msra.mxu0 0.0
  %127 = vmatprep.subr.mxu0 0.0
  %128 = vmatpush1.xpose.msra.mxu0 0.0
  %129 = vmatprep.subr.mxu0 0.0
  %130 = vmatpush1.xpose.msra.mxu0 0.0
  %131 = vmatprep.subr.mxu0 0.0
  %132 = vmatpush1.xpose.msra.mxu0 0.0
  %133 = vmatprep.subr.mxu0 0.0
  %134 = vmatpush1.xpose.msra.mxu0 0.0
  %135 = vmatprep.subr.mxu0 0.0
  %136 = vmatpush1.xpose.msra.mxu0 %v103
  %137 = vmatprep.subr.mxu0 0.0
  %138 = vmatpush2.xpose.msra.mxu0 0.0
  %139 = vmatprep.subr.mxu0 0.0
  %140 = vmatpush2.xpose.msra.mxu0 0.0
  %141 = vmatprep.subr.mxu0 0.0
  %142 = vmatpush2.xpose.msra.mxu0 0.0
  %143 = vmatprep.subr.mxu0 0.0
  %144 = vmatpush2.xpose.msra.mxu0 0.0
  %145 = vmatprep.subr.mxu0 0.0
  %146 = vmatpush2.xpose.msra.mxu0 0.0
  %147 = vmatprep.subr.mxu0 0.0
  %148 = vmatpush2.xpose.msra.mxu0 0.0
  %149 = vmatprep.subr.mxu0 0.0
  %150 = vmatpush2.xpose.msra.mxu0 0.0
  %151 = vmatprep.subr.mxu0 0.0
  %152 = vmatpush2.xpose.msra.mxu0 0.0
  %153 = vmatprep.subr.mxu0 0.0
  %154 = vmatpush2.xpose.msra.mxu0 0.0
  %155 = vmatprep.subr.mxu0 0.0
  %156 = vmatpush2.xpose.msra.mxu0 0.0
  %157 = vmatprep.subr.mxu0 0.0
  %158 = vmatpush2.xpose.msra.mxu0 0.0
  %159 = vmatprep.subr.mxu0 0.0
  %160 = vmatpush2.xpose.msra.mxu0 0.0
  %161 = vmatprep.subr.mxu0 0.0
  %162 = vmatpush2.xpose.msra.mxu0 0.0
  %163 = vmatprep.subr.mxu0 0.0
  %164 = vmatpush2.xpose.msra.mxu0 0.0
  %165 = vmatprep.subr.mxu0 0.0
  %166 = vmatpush2.xpose.msra.mxu0 0.0
  %167 = vmatprep.subr.mxu0 0.0
  %168 = vmatpush2.xpose.msra.mxu0 0.0
  %169 = vmatprep.mubr.f32.mxu0 0.0
  %170 = vmatmul.mubr.f32.gmra.mxu0 %v79
  %v171 = vpop.f32.mrf.mxu0
  %v172 = vadd.f32 %v40, %v171
  %v173 = vpop.f32.mrf.mxu0
  %174 = vmatprep.mubr.f32.mxu0 0.0
  %175 = vmatmul.mubr.f32.gmra.mxu0 %v82
  %v176 = vpop.f32.mrf.mxu0
  %v177 = vadd.f32 %v45, %v176
  %v178 = vpop.f32.mrf.mxu0
  %179 = vmatprep.mubr.f32.mxu0 0.0
  %180 = vmatmul.mubr.f32.gmra.mxu0 %v85
  %v181 = vpop.f32.mrf.mxu0
  %v182 = vadd.f32 %v50, %v181
  %v183 = vpop.f32.mrf.mxu0
  %184 = vmatprep.mubr.f32.mxu0 0.0
  %185 = vmatmul.mubr.f32.gmra.mxu0 %v88
  %v186 = vpop.f32.mrf.mxu0
  %v187 = vadd.f32 %v55, %v186
  %v188 = vpop.f32.mrf.mxu0
  %189 = vmatprep.mubr.f32.mxu0 0.0
  %190 = vmatmul.mubr.f32.gmra.mxu0 %v91
  %v191 = vpop.f32.mrf.mxu0
  %v192 = vadd.f32 %v60, %v191
  %v193 = vpop.f32.mrf.mxu0
  %194 = vmatprep.mubr.f32.mxu0 0.0
  %195 = vmatmul.mubr.f32.gmra.mxu0 %v94
  %v196 = vpop.f32.mrf.mxu0
  %v197 = vadd.f32 %v65, %v196
  %v198 = vpop.f32.mrf.mxu0
  %199 = vmatprep.mubr.f32.mxu0 0.0
  %200 = vmatmul.mubr.f32.gmra.mxu0 %v97
  %v201 = vpop.f32.mrf.mxu0
  %v202 = vadd.f32 %v70, %v201
  %v203 = vpop.f32.mrf.mxu0
  %204 = vmatprep.mubr.f32.mxu0 0.0
  %205 = vmatmul.mubr.f32.gmra.mxu0 %v100
  %v206 = vpop.f32.mrf.mxu0
  %v207 = vadd.f32 %v75, %v206
  %v208 = vpop.f32.mrf.mxu0
  %209 = vdwg.mxu0
  %v210 = vmax.f32 %v172, 0.0
  %v211 = vmax.f32 %v177, 0.0
  %v212 = vmax.f32 %v182, 0.0
  %v213 = vmax.f32 %v187, 0.0
  %v214 = vmax.f32 %v192, 0.0
  %v215 = vmax.f32 %v197, 0.0
  %v216 = vmax.f32 %v202, 0.0
  %v217 = vmax.f32 %v207, 0.0
  %v218 = vld [vmem:[%s3] sm:$0xff]
  %v219 = vld [vmem:[%s3 + $0x8] sm:$0xff]
  %v220 = vld [vmem:[%s4] sm:$0xff]
  %v221 = vld [vmem:[%s4 + $0x8] sm:$0xff]
  %223 = vset.pattern.permute.xlu0 0
  %224 = vperm.xlu0 %223, %v220
  %v225 = vpop.permute.xlu0 %224
  %228 = vset.pattern.permute.xlu0 0
  %229 = vperm.xlu0 %228, %v221
  %v230 = vpop.permute.xlu0 %229
  %vm232 = vcmask 523264
  %v234 = vsel %vm232, %v218, 0
  %v237 = vsel %vm232, %v219, 0
  %239 = vmatprep.subr.mxu0 0.0
  %240 = vmatpush1.msra.mxu0 0.0
  %241 = vmatprep.subr.mxu0 0.0
  %242 = vmatpush1.msra.mxu0 0.0
  %243 = vmatprep.subr.mxu0 0.0
  %244 = vmatpush1.msra.mxu0 0.0
  %245 = vmatprep.subr.mxu0 0.0
  %246 = vmatpush1.msra.mxu0 0.0
  %247 = vmatprep.subr.mxu0 0.0
  %248 = vmatpush1.msra.mxu0 0.0
  %249 = vmatprep.subr.mxu0 0.0
  %250 = vmatpush1.msra.mxu0 0.0
  %251 = vmatprep.subr.mxu0 0.0
  %252 = vmatpush1.msra.mxu0 0.0
  %253 = vmatprep.subr.mxu0 0.0
  %254 = vmatpush1.msra.mxu0 0.0
  %255 = vmatprep.subr.mxu0 0.0
  %256 = vmatpush1.msra.mxu0 %v217
  %257 = vmatprep.subr.mxu0 0.0
  %258 = vmatpush1.msra.mxu0 %v216
  %259 = vmatprep.subr.mxu0 0.0
  %260 = vmatpush1.msra.mxu0 %v215
  %261 = vmatprep.subr.mxu0 0.0
  %262 = vmatpush1.msra.mxu0 %v214
  %263 = vmatprep.subr.mxu0 0.0
  %264 = vmatpush1.msra.mxu0 %v213
  %265 = vmatprep.subr.mxu0 0.0
  %266 = vmatpush1.msra.mxu0 %v212
  %267 = vmatprep.subr.mxu0 0.0
  %268 = vmatpush1.msra.mxu0 %v211
  %269 = vmatprep.subr.mxu0 0.0
  %270 = vmatpush1.msra.mxu0 %v210
  %271 = vmatprep.subr.mxu0 0.0
  %272 = vmatpush2.msra.mxu0 0.0
  %273 = vmatprep.subr.mxu0 0.0
  %274 = vmatpush2.msra.mxu0 0.0
  %275 = vmatprep.subr.mxu0 0.0
  %276 = vmatpush2.msra.mxu0 0.0
  %277 = vmatprep.subr.mxu0 0.0
  %278 = vmatpush2.msra.mxu0 0.0
  %279 = vmatprep.subr.mxu0 0.0
  %280 = vmatpush2.msra.mxu0 0.0
  %281 = vmatprep.subr.mxu0 0.0
  %282 = vmatpush2.msra.mxu0 0.0
  %283 = vmatprep.subr.mxu0 0.0
  %284 = vmatpush2.msra.mxu0 0.0
  %285 = vmatprep.subr.mxu0 0.0
  %286 = vmatpush2.msra.mxu0 0.0
  %287 = vmatprep.subr.mxu0 0.0
  %288 = vmatpush2.msra.mxu0 0.0
  %289 = vmatprep.subr.mxu0 0.0
  %290 = vmatpush2.msra.mxu0 0.0
  %291 = vmatprep.subr.mxu0 0.0
  %292 = vmatpush2.msra.mxu0 0.0
  %293 = vmatprep.subr.mxu0 0.0
  %294 = vmatpush2.msra.mxu0 0.0
  %295 = vmatprep.subr.mxu0 0.0
  %296 = vmatpush2.msra.mxu0 0.0
  %297 = vmatprep.subr.mxu0 0.0
  %298 = vmatpush2.msra.mxu0 0.0
  %299 = vmatprep.subr.mxu0 0.0
  %300 = vmatpush2.msra.mxu0 0.0
  %301 = vmatprep.subr.mxu0 0.0
  %302 = vmatpush2.msra.mxu0 0.0
  %303 = vmatprep.mubr.f32.mxu0 0.0
  %304 = vmatmul.mubr.f32.gmra.mxu0 %v234
  %v305 = vpop.f32.mrf.mxu0
  %v306 = vadd.f32 %v225, %v305
  %v307 = vpop.f32.mrf.mxu0
  %308 = vmatprep.mubr.f32.mxu0 0.0
  %309 = vmatmul.mubr.f32.gmra.mxu0 %v237
  %v310 = vpop.f32.mrf.mxu0
  %v311 = vadd.f32 %v230, %v310
  %v312 = vpop.f32.mrf.mxu0
  %313 = vdwg.mxu0
  %vm314 = vcmask 64512
  %v315 = vsel %vm314, %v306, -inf
  %v316 = vsel %vm314, %v311, -inf
  %v317 = vmax.f32 %v315, %v316
  %v318 = vrot.slane %v317, 4
  %v319 = vmax.f32 %v317, %v318
  %v320 = vrot.slane %v319, 2
  %v321 = vmax.f32 %v319, %v320
  %v322 = vrot.slane %v321, 1
  %v323 = vmax.f32 %v321, %v322
  %v324 = vsub.f32 %v306, %v323
  %v325 = vsub.f32 %v311, %v323
  %v326 = vmul.f32 %v324, 1.442695
  %v327 = vpow.pop %v326
  %v328 = vmul.f32 %v325, 1.442695
  %v329 = vpow.pop %v328
  %v330 = vsel %vm314, %v327, 0.0
  %v331 = vsel %vm314, %v329, 0.0
  %v332 = vadd.f32 %v330, %v331
  %v333 = vrot.slane %v332, 4
  %v334 = vadd.f32 %v332, %v333
  %v335 = vrot.slane %v334, 2
  %v336 = vadd.f32 %v334, %v335
  %v337 = vrot.slane %v336, 1
  %v338 = vadd.f32 %v336, %v337
  %v339 = vrcp.pop %v338
  %v340 = vmul.f32 %v327, %v339
  %v341 = vmul.f32 %v329, %v339
  %342 = vst.msk [vmem:[%s5] sm:$0xff] %vm314, %v340
  %343 = vst.msk [vmem:[%s5 + $0x8] sm:$0xff] %vm314, %v341
  // Predicated region
  $region22: #{tpu_custom_call.1} parent=0 // pred_check
    _
  $region23: #{tpu_custom_call.1} parent=0 // pred_check_branch
    %345 = sbr.rel (0) target = $region25
  $region24: #{tpu_custom_call.1} parent=0 // pred_region
    _
  $region25: #{tpu_custom_call.1} parent=0 // pred_fallthru
    _
  // Predicated region
  $region26: #{tpu_custom_call.1} parent=0 // pred_check
    _
  $region27: #{tpu_custom_call.1} parent=0 // pred_check_branch
    %347 = sbr.rel (0) target = $region29
  $region28: #{tpu_custom_call.1} parent=0 // pred_region
    _
  $region29: #{tpu_custom_call.1} parent=0 // pred_fallthru
    _

</llo_original>
